<compile_context>
chip_gen: v7x
topology: tpu7x:2x2x1
jax: 0.10.0
libtpu: 0.0.40
codegen_flags: <defaults>
</compile_context>

<pallas_src>
import jax
import jax.numpy as jnp
from jax.experimental import pallas as pl
from jax.experimental.pallas import tpu as pltpu


def _round_up(n, m):
    return ((n + m - 1) // m) * m


def _projection_head_kernel(x_ref, w1_ref, b1_ref, w2_ref, b2_ref, o_ref):
    # MXU matmuls in bf16 with f32 accumulation; bias/activation in f32 on VPU.
    x = x_ref[...].astype(jnp.bfloat16)
    h = jnp.dot(x, w1_ref[...], preferred_element_type=jnp.float32)
    h = h + b1_ref[...]
    # LeakyReLU(negative_slope=0.1)
    h = jnp.maximum(h, 0.1 * h)
    out = jnp.dot(h.astype(jnp.bfloat16), w2_ref[...],
                  preferred_element_type=jnp.float32)
    out = out + b2_ref[...]
    o_ref[...] = out.astype(o_ref.dtype)


def projection_head(x, w1, b1, w2, b2, *, tile_b=1024, out_dtype=None):
    """Fused forward pass of ProjectionHead.

    x : [B, input_dim] (f32 or bf16)
    w1: [input_dim, 512], b1: [1, 512]
    w2: [512, output_dim], b2: [1, output_dim]
    returns [B, output_dim] in x.dtype (or out_dtype if given)

    Numerics note: matmul operands are downcast to bf16 for the MXU with f32
    accumulation (tolerance ~2e-2 vs an f32 reference).
    """
    B, d_in = x.shape
    hidden = w1.shape[1]
    d_out = w2.shape[1]
    out_dtype = x.dtype if out_dtype is None else out_dtype

    # Weights feed the MXU in bf16 (halves weight DMA/VMEM); biases stay f32.
    w1 = w1.astype(jnp.bfloat16)
    w2 = w2.astype(jnp.bfloat16)
    b1 = b1.astype(jnp.float32)
    b2 = b2.astype(jnp.float32)

    # Tile selection:
    #  * cap at tile_b (default 1024: fits v5e's 16 MiB scoped VMEM; fine on
    #    v6e/v7x too),
    #  * aim for >= 2 grid steps so v7x's two TensorCores are both used,
    #  * keep the sublane dim a multiple of 8, floor at 8 for tiny batches.
    tb = max(8, min(tile_b, _round_up(pl.cdiv(B, 2), 8)))
    grid = (pl.cdiv(B, tb),)

    in_bytes = jnp.dtype(x.dtype).itemsize
    out_bytes = jnp.dtype(out_dtype).itemsize
    cost = pl.CostEstimate(
        flops=2 * B * (d_in * hidden + hidden * d_out),
        transcendentals=0,
        bytes_accessed=(B * d_in * in_bytes
                        + B * d_out * out_bytes
                        + (d_in * hidden + hidden * d_out) * 2   # bf16 weights
                        + (hidden + d_out) * 4),                 # f32 biases
    )

    return pl.pallas_call(
        _projection_head_kernel,
        out_shape=jax.ShapeDtypeStruct((B, d_out), out_dtype),
        grid_spec=pl.GridSpec(
            grid=grid,
            in_specs=[
                pl.BlockSpec((tb, d_in), lambda i: (i, 0)),       # x tile
                # Constant index_maps: weights/biases stay resident in VMEM,
                # no re-DMA across grid steps.
                pl.BlockSpec((d_in, hidden), lambda i: (0, 0)),   # W1 (bf16)
                pl.BlockSpec((1, hidden), lambda i: (0, 0)),      # b1 (f32)
                pl.BlockSpec((hidden, d_out), lambda i: (0, 0)),  # W2 (bf16)
                pl.BlockSpec((1, d_out), lambda i: (0, 0)),       # b2 (f32)
            ],
            out_specs=pl.BlockSpec((tb, d_out), lambda i: (i, 0)),
        ),
        compiler_params=pltpu.CompilerParams(
            dimension_semantics=("parallel",),
        ),
        cost_estimate=cost,
    )(x, w1, b1, w2, b2)


def _reference(x, w1, b1, w2, b2):
    h = x @ w1 + b1
    h = jnp.where(h > 0, h, 0.1 * h)
    return h @ w2 + b2


if __name__ == "__main__":
    # Small, deterministic problem consistent with the module:
    # input_dim=32, hidden=512 (fixed by the module), output_dim=256 (default).
    INPUT_DIM, HIDDEN, OUTPUT_DIM = 32, 512, 256

    key = jax.random.PRNGKey(0)
    kx, kw1, kb1, kw2, kb2 = jax.random.split(key, 5)

    # PyTorch stores weights as [out, in]; we keep them pre-transposed [in, out].
    w1 = jax.random.normal(kw1, (INPUT_DIM, HIDDEN), dtype=jnp.float32) * 0.05
    b1 = jax.random.normal(kb1, (1, HIDDEN), dtype=jnp.float32) * 0.05
    w2 = jax.random.normal(kw2, (HIDDEN, OUTPUT_DIM), dtype=jnp.float32) * 0.05
    b2 = jax.random.normal(kb2, (1, OUTPUT_DIM), dtype=jnp.float32) * 0.05

    # Case 1: small ragged batch (B not a multiple of the tile) -> exercises
    # the Pallas-masked tail block (no wrapper pad/slice) and a 2-step grid.
    B1 = 20
    x1 = jax.random.normal(kx, (B1, INPUT_DIM), dtype=jnp.float32)
    out1 = jax.block_until_ready(projection_head(x1, w1, b1, w2, b2))
    ref1 = _reference(x1, w1, b1, w2, b2)
    assert out1.shape == (B1, OUTPUT_DIM)
    assert out1.dtype == jnp.float32
    # bf16 matmul operands -> looser tolerance vs f32 reference.
    assert jnp.allclose(out1, ref1, atol=2e-2, rtol=2e-2)

    # Case 2: multi-step grid with a ragged tail (72 = 2*32 + 8) -> exercises
    # resident-weight reuse across grid steps and tail masking together.
    B2 = 72
    x2 = jax.random.normal(jax.random.PRNGKey(1), (B2, INPUT_DIM),
                           dtype=jnp.float32)
    out2 = jax.block_until_ready(
        projection_head(x2, w1, b1, w2, b2, tile_b=32))
    ref2 = _reference(x2, w1, b1, w2, b2)
    assert out2.shape == (B2, OUTPUT_DIM)
    assert jnp.allclose(out2, ref2, atol=2e-2, rtol=2e-2)

    # Case 3: evenly divisible batch, default tiling (>= 2 grid steps for
    # v7x dual-TC sharding).
    B3 = 64
    x3 = jax.random.normal(jax.random.PRNGKey(2), (B3, INPUT_DIM),
                           dtype=jnp.float32)
    out3 = jax.block_until_ready(projection_head(x3, w1, b1, w2, b2))
    ref3 = _reference(x3, w1, b1, w2, b2)
    assert out3.shape == (B3, OUTPUT_DIM)
    assert jnp.allclose(out3, ref3, atol=2e-2, rtol=2e-2)

    print("KERNEL_OK")
</pallas_src>

<mosaic_0001>
module attributes {stable_mosaic.version = 11 : i64} {
  func.func @_projection_head_kernel(%arg0: i32, %arg1: memref<16x32xf32, #tpu.memory_space<vmem>>, %arg2: memref<32x512xbf16, #tpu.memory_space<vmem>>, %arg3: memref<1x512xf32, #tpu.memory_space<vmem>>, %arg4: memref<512x256xbf16, #tpu.memory_space<vmem>>, %arg5: memref<1x256xf32, #tpu.memory_space<vmem>>, %arg6: memref<16x256xf32, #tpu.memory_space<vmem>>) attributes {dimension_semantics = [#tpu.dimension_semantics<parallel>], iteration_bounds = array<i64: 2>, scalar_prefetch = 0 : i64, scratch_operands = 0 : i64, tpu.core_type = #tpu.core_type<tc>, window_params = [{transform_indices = @transform_0, window_bounds = array<i64: 16, 32>}, {pipeline_mode = #tpu.pipeline_mode<synchronous>, transform_indices = @transform_1, window_bounds = array<i64: 32, 512>}, {pipeline_mode = #tpu.pipeline_mode<synchronous>, transform_indices = @transform_2, window_bounds = array<i64: 1, 512>}, {pipeline_mode = #tpu.pipeline_mode<synchronous>, transform_indices = @transform_3, window_bounds = array<i64: 512, 256>}, {pipeline_mode = #tpu.pipeline_mode<synchronous>, transform_indices = @transform_4, window_bounds = array<i64: 1, 256>}, {transform_indices = @transform_5, window_bounds = array<i64: 16, 256>}]} {
    %c0 = arith.constant 0 : index
    %c0_0 = arith.constant 0 : index
    %0 = vector.load %arg1[%c0, %c0_0] : memref<16x32xf32, #tpu.memory_space<vmem>>, vector<16x32xf32>
    %1 = arith.truncf %0 : vector<16x32xf32> to vector<16x32xbf16>
    %c0_1 = arith.constant 0 : index
    %c0_2 = arith.constant 0 : index
    %2 = vector.load %arg2[%c0_1, %c0_2] : memref<32x512xbf16, #tpu.memory_space<vmem>>, vector<32x512xbf16>
    %cst = arith.constant dense<0.000000e+00> : vector<16x512xf32>
    %3 = tpu.matmul %1, %2, %cst {dimension_numbers = #tpu.dot_dimension_numbers<[1], [0], [0], [1], [0, 0, 1, 1], [], []>} : vector<16x32xbf16>, vector<32x512xbf16>, vector<16x512xf32> -> vector<16x512xf32>
    %c0_3 = arith.constant 0 : index
    %c0_4 = arith.constant 0 : index
    %4 = vector.load %arg3[%c0_3, %c0_4] : memref<1x512xf32, #tpu.memory_space<vmem>>, vector<1x512xf32>
    %5 = vector.broadcast %4 : vector<1x512xf32> to vector<16x512xf32>
    %6 = arith.addf %3, %5 : vector<16x512xf32>
    %cst_5 = arith.constant 1.000000e-01 : f32
    %7 = vector.broadcast %cst_5 : f32 to vector<16x512xf32>
    %8 = arith.mulf %7, %6 : vector<16x512xf32>
    %9 = arith.maximumf %6, %8 : vector<16x512xf32>
    %10 = arith.truncf %9 : vector<16x512xf32> to vector<16x512xbf16>
    %c0_6 = arith.constant 0 : index
    %c0_7 = arith.constant 0 : index
    %11 = vector.load %arg4[%c0_6, %c0_7] : memref<512x256xbf16, #tpu.memory_space<vmem>>, vector<512x256xbf16>
    %cst_8 = arith.constant dense<0.000000e+00> : vector<16x256xf32>
    %12 = tpu.matmul %10, %11, %cst_8 {dimension_numbers = #tpu.dot_dimension_numbers<[1], [0], [0], [1], [0, 0, 1, 1], [], []>} : vector<16x512xbf16>, vector<512x256xbf16>, vector<16x256xf32> -> vector<16x256xf32>
    %c0_9 = arith.constant 0 : index
    %c0_10 = arith.constant 0 : index
    %13 = vector.load %arg5[%c0_9, %c0_10] : memref<1x256xf32, #tpu.memory_space<vmem>>, vector<1x256xf32>
    %14 = vector.broadcast %13 : vector<1x256xf32> to vector<16x256xf32>
    %15 = arith.addf %12, %14 : vector<16x256xf32>
    %c0_11 = arith.constant 0 : index
    %c0_12 = arith.constant 0 : index
    %16 = vector.load %arg6[%c0_11, %c0_12] : memref<16x256xf32, #tpu.memory_space<vmem>>, vector<16x256xf32>
    tpu.vector_store %arg6[%c0_11, %c0_12], %15 {strides = array<i32>} : memref<16x256xf32, #tpu.memory_space<vmem>>, vector<16x256xf32>,
    return
  }
  func.func @transform_0(%arg0: i32) -> (i32, i32) {
    %c0_i32 = arith.constant 0 : i32
    %c0_i32_0 = arith.constant 0 : i32
    return %arg0, %c0_i32 : i32, i32
  }
  func.func @transform_1(%arg0: i32) -> (i32, i32) {
    %c0_i32 = arith.constant 0 : i32
    %c0_i32_0 = arith.constant 0 : i32
    %c0_i32_1 = arith.constant 0 : i32
    return %c0_i32, %c0_i32_0 : i32, i32
  }
  func.func @transform_2(%arg0: i32) -> (i32, i32) {
    %c0_i32 = arith.constant 0 : i32
    %c0_i32_0 = arith.constant 0 : i32
    %c0_i32_1 = arith.constant 0 : i32
    return %c0_i32, %c0_i32_0 : i32, i32
  }
  func.func @transform_3(%arg0: i32) -> (i32, i32) {
    %c0_i32 = arith.constant 0 : i32
    %c0_i32_0 = arith.constant 0 : i32
    %c0_i32_1 = arith.constant 0 : i32
    return %c0_i32, %c0_i32_0 : i32, i32
  }
  func.func @transform_4(%arg0: i32) -> (i32, i32) {
    %c0_i32 = arith.constant 0 : i32
    %c0_i32_0 = arith.constant 0 : i32
    %c0_i32_1 = arith.constant 0 : i32
    return %c0_i32, %c0_i32_0 : i32, i32
  }
  func.func @transform_5(%arg0: i32) -> (i32, i32) {
    %c0_i32 = arith.constant 0 : i32
    %c0_i32_0 = arith.constant 0 : i32
    return %arg0, %c0_i32 : i32, i32
  }
}

</mosaic_0001>

<llo_original>
// kernel: tpu_custom_call.1
$region0: #{tpu_custom_call.1}
  #allocation0 [shape = 'u32[]', space=smem, size = 0x4, offset = 0x4, fixed_abs, tag = 'smem constant byte address 0x4 - core index']
  #allocation1 [shape = 'u32[144,128]{1,0:T(1,128)}', space=vmem, size = 0x12000, scoped, tag = 'internal scratch']
  %s0 = inlined_call_operand.hbm [shape: f32[20,32], index: 0, kind: input, shape index: {}]
  %s1 = inlined_call_operand.hbm [shape: bf16[32,512], index: 1, kind: input, shape index: {}]
  %s2 = inlined_call_operand.vmem [shape: f32[1,512], index: 2, kind: input, shape index: {}]
  %s3 = inlined_call_operand.hbm [shape: bf16[512,256], index: 3, kind: input, shape index: {}]
  %s4 = inlined_call_operand.vmem [shape: f32[1,256], index: 4, kind: input, shape index: {}]
  %s5 = inlined_call_operand.hbm [shape: f32[20,256], index: 5, kind: output, shape index: {}]
  %s6 = sld [smem:[#allocation0]]
  $region65: #{tpu_custom_call.1} parent=0
    _
  %s8 = ssub.s32 1, %s6
  %s9 = scalar_select 0, %s8, %s6
  $region1: #{tpu_custom_call.1} parent=0
    #allocation2 [shape = 'u8[16384]{0}', space=vmem, size = 0x4000, scoped, tag = 'input window, operand 0']
    #allocation3 [shape = 's32[2]{0}', space=sflag, size = 0x8, scoped, tag = 'scoped memory for tpu_custom_call.1']
    #allocation4 [shape = 's32[2]{0}', space=sflag, size = 0x8, scoped, tag = 'scoped memory for tpu_custom_call.1']
    #allocation5 [shape = 'u8[32768]{0}', space=vmem, size = 0x8000, scoped, tag = 'input window, operand 1, single buffered']
    #allocation6 [shape = 's32[1]{0}', space=sflag, size = 0x4, scoped, tag = 'scoped memory for tpu_custom_call.1']
    #allocation7 [shape = 'u8[262144]{0}', space=vmem, size = 0x40000, scoped, tag = 'input window, operand 3, single buffered']
    #allocation8 [shape = 'u8[32768]{0}', space=vmem, size = 0x8000, scoped, tag = 'output window, operand 0']
    %10 = vsyncpa [#allocation3], 0
    %s11 = scalar_lea.sflag [#allocation3], 1
    %12 = vsyncpa %s11, 0
    %13 = vsyncpa [#allocation6], 0
    %14 = vsyncpa [#allocation4], 0
    %s15 = scalar_lea.sflag [#allocation4], 1
    %16 = vsyncpa %s15, 0
    loop: start=0, step=1, limit=4
    $region2: #{tpu_custom_call.1} parent=1 // loop_pre_header
      _
    $region3: #{tpu_custom_call.1} parent=1 // loop_header
      %s18 = sphi 0, %s22
      %p19 = scmp.ge.s32.totalorder %s18, 4
      %s28 = sphi 0, %s30
      %s31 = sphi 0, %s28
      %s32 = sphi 0, %s31
      %s48 = sphi 0, %s32
      %s52 = sphi 0, %s52
      %s54 = sphi 0, %s52
      %s55 = sphi 0, %s54
      %s69 = sphi 0, %s55
      %s73 = sphi 0, %s73
      %s75 = sphi 0, %s73
      %s76 = sphi 0, %s75
      %s90 = sphi 0, %s76
      %s94 = sphi 0, %s94
      %s96 = sphi 0, %s94
      %s97 = sphi 0, %s96
      %s111 = sphi 0, %s97
      %s115 = sphi 0, %s115
      %s117 = sphi 0, %s115
      %s118 = sphi 0, %s117
      %s132 = sphi 0, %s118
      %s138 = sphi 0, %s140
      %s141 = sphi 0, %s138
      %s142 = sphi 0, %s141
      %s158 = sphi 0, %s142
    $region4: #{tpu_custom_call.1} parent=1 // loop_header_branch
      %21 = sbr.rel (%p19) target = $region8
    $region5: #{tpu_custom_call.1} parent=1 // loop_body
      %s23 = ssub.s32 %s18, 1
      %s24 = ssub.s32 %s18, 2
      %s25 = sadd.s32 %s18, 1
      %s26 = ssub.s32 %s18, %s25
      %p27 = scmp.eq.s32.totalorder %s26, 0
      %s29 = sadd.s32 %s28, 1
      %s30 = scalar_select %p27, %s28, %s29
      %p33 = pneg %p27
      %p34 = scmp.eq.s32.totalorder %s18, 1
      %p35 = por %p33, %p34
      %p36 = scmp.ne.s32.totalorder %s28, %s31
      %p37 = scmp.eq.s32.totalorder %s18, 0
      %p38 = por %p36, %p37
      %p39 = scmp.ne.s32.totalorder %s28, %s31
      %p40 = scmp.eq.s32.totalorder %s23, 1
      %p41 = por %p39, %p40
      %p42 = scmp.ne.s32.totalorder %s31, %s32
      %p43 = scmp.eq.s32.totalorder %s23, 0
      %p44 = por %p42, %p43
      %p45 = scmp.ne.s32.totalorder %s31, %s32
      %p46 = scmp.eq.s32.totalorder %s24, 1
      %p47 = por %p45, %p46
      %p49 = scmp.ne.s32.totalorder %s32, %s48
      %p50 = scmp.eq.s32.totalorder %s24, 0
      %p51 = por %p49, %p50
      %s53 = sadd.s32 %s52, 1
      %p56 = scmp.eq.s32.totalorder %s18, 1
      %p57 = scmp.ne.s32.totalorder %s52, %s54
      %p58 = scmp.eq.s32.totalorder %s18, 0
      %p59 = por %p57, %p58
      %p60 = scmp.ne.s32.totalorder %s52, %s54
      %p61 = scmp.eq.s32.totalorder %s23, 1
      %p62 = por %p60, %p61
      %p63 = scmp.ne.s32.totalorder %s54, %s55
      %p64 = scmp.eq.s32.totalorder %s23, 0
      %p65 = por %p63, %p64
      %p66 = scmp.ne.s32.totalorder %s54, %s55
      %p67 = scmp.eq.s32.totalorder %s24, 1
      %p68 = por %p66, %p67
      %p70 = scmp.ne.s32.totalorder %s55, %s69
      %p71 = scmp.eq.s32.totalorder %s24, 0
      %p72 = por %p70, %p71
      %s74 = sadd.s32 %s73, 1
      %p77 = scmp.eq.s32.totalorder %s18, 1
      %p78 = scmp.ne.s32.totalorder %s73, %s75
      %p79 = scmp.eq.s32.totalorder %s18, 0
      %p80 = por %p78, %p79
      %p81 = scmp.ne.s32.totalorder %s73, %s75
      %p82 = scmp.eq.s32.totalorder %s23, 1
      %p83 = por %p81, %p82
      %p84 = scmp.ne.s32.totalorder %s75, %s76
      %p85 = scmp.eq.s32.totalorder %s23, 0
      %p86 = por %p84, %p85
      %p87 = scmp.ne.s32.totalorder %s75, %s76
      %p88 = scmp.eq.s32.totalorder %s24, 1
      %p89 = por %p87, %p88
      %p91 = scmp.ne.s32.totalorder %s76, %s90
      %p92 = scmp.eq.s32.totalorder %s24, 0
      %p93 = por %p91, %p92
      %s95 = sadd.s32 %s94, 1
      %p98 = scmp.eq.s32.totalorder %s18, 1
      %p99 = scmp.ne.s32.totalorder %s94, %s96
      %p100 = scmp.eq.s32.totalorder %s18, 0
      %p101 = por %p99, %p100
      %p102 = scmp.ne.s32.totalorder %s94, %s96
      %p103 = scmp.eq.s32.totalorder %s23, 1
      %p104 = por %p102, %p103
      %p105 = scmp.ne.s32.totalorder %s96, %s97
      %p106 = scmp.eq.s32.totalorder %s23, 0
      %p107 = por %p105, %p106
      %p108 = scmp.ne.s32.totalorder %s96, %s97
      %p109 = scmp.eq.s32.totalorder %s24, 1
      %p110 = por %p108, %p109
      %p112 = scmp.ne.s32.totalorder %s97, %s111
      %p113 = scmp.eq.s32.totalorder %s24, 0
      %p114 = por %p112, %p113
      %s116 = sadd.s32 %s115, 1
      %p119 = scmp.eq.s32.totalorder %s18, 1
      %p120 = scmp.ne.s32.totalorder %s115, %s117
      %p121 = scmp.eq.s32.totalorder %s18, 0
      %p122 = por %p120, %p121
      %p123 = scmp.ne.s32.totalorder %s115, %s117
      %p124 = scmp.eq.s32.totalorder %s23, 1
      %p125 = por %p123, %p124
      %p126 = scmp.ne.s32.totalorder %s117, %s118
      %p127 = scmp.eq.s32.totalorder %s23, 0
      %p128 = por %p126, %p127
      %p129 = scmp.ne.s32.totalorder %s117, %s118
      %p130 = scmp.eq.s32.totalorder %s24, 1
      %p131 = por %p129, %p130
      %p133 = scmp.ne.s32.totalorder %s118, %s132
      %p134 = scmp.eq.s32.totalorder %s24, 0
      %p135 = por %p133, %p134
      %s136 = ssub.s32 %s18, %s25
      %p137 = scmp.eq.s32.totalorder %s136, 0
      %s139 = sadd.s32 %s138, 1
      %s140 = scalar_select %p137, %s138, %s139
      %p143 = pneg %p137
      %p144 = scmp.eq.s32.totalorder %s18, 1
      %p145 = por %p143, %p144
      %p146 = scmp.ne.s32.totalorder %s138, %s141
      %p147 = scmp.eq.s32.totalorder %s18, 0
      %p148 = por %p146, %p147
      %p149 = scmp.ne.s32.totalorder %s138, %s141
      %p150 = scmp.eq.s32.totalorder %s23, 1
      %p151 = por %p149, %p150
      %p152 = scmp.ne.s32.totalorder %s141, %s142
      %p153 = scmp.eq.s32.totalorder %s23, 0
      %p154 = por %p152, %p153
      %p155 = scmp.ne.s32.totalorder %s141, %s142
      %p156 = scmp.eq.s32.totalorder %s24, 1
      %p157 = por %p155, %p156
      %p159 = scmp.ne.s32.totalorder %s142, %s158
      %p160 = scmp.eq.s32.totalorder %s24, 0
      %p161 = por %p159, %p160
      %p162 = scmp.le.s32.totalorder 1, %s18
      %p163 = scmp.lt.s32.totalorder %s18, 3
      %p164 = pnand %p162, %p163
      %p165 = pneg %p164
      // Predicated region
      $region9: #{tpu_custom_call.1} parent=5 // pred_check
        _
      $region10: #{tpu_custom_call.1} parent=5 // pred_check_branch
        %167 = sbr.rel (%p164) target = $region12
      $region11: #{tpu_custom_call.1} parent=5 // pred_region
        %s168 = ssub.s32 %s18, 1
        // Predicated region
        $region13: #{tpu_custom_call.1} parent=11 // pred_check
          %p169 = pneg %p65
        $region14: #{tpu_custom_call.1} parent=11 // pred_check_branch
          %171 = sbr.rel (%p169) target = $region16
        $region15: #{tpu_custom_call.1} parent=11 // pred_region
          %s173 = ssub.s32 1024, 1024
          %174 = vsyncadd [#allocation6], %s173
          %s175 = sshll.u32 [#allocation5], 4
          %s176 = int_to_ptr.vmem [resolvable:$true] %s175
          %181 = dma.hbm_to_vmem [thread:$0]  %s1, 1024, %s176, [#allocation6], 256, 256, 16
        $region16: #{tpu_custom_call.1} parent=11 // pred_fallthru
          _
        // Predicated region
        $region17: #{tpu_custom_call.1} parent=11 // pred_check
          %p182 = pneg %p86
        $region18: #{tpu_custom_call.1} parent=11 // pred_check_branch
          %184 = sbr.rel (%p182) target = $region20
        $region19: #{tpu_custom_call.1} parent=11 // pred_region
          _
        $region20: #{tpu_custom_call.1} parent=11 // pred_fallthru
          _
        // Predicated region
        $region21: #{tpu_custom_call.1} parent=11 // pred_check
          %p185 = pneg %p107
        $region22: #{tpu_custom_call.1} parent=11 // pred_check_branch
          %187 = sbr.rel (%p185) target = $region24
        $region23: #{tpu_custom_call.1} parent=11 // pred_region
          %s189 = ssub.s32 8192, 8192
          %190 = vsyncadd [#allocation6], %s189
          %s191 = sshll.u32 [#allocation7], 4
          %s192 = int_to_ptr.vmem [resolvable:$true] %s191
          %197 = dma.hbm_to_vmem [thread:$0]  %s3, 8192, %s192, [#allocation6], 128, 128, 8
        $region24: #{tpu_custom_call.1} parent=11 // pred_fallthru
          _
        // Predicated region
        $region25: #{tpu_custom_call.1} parent=11 // pred_check
          %p198 = pneg %p128
        $region26: #{tpu_custom_call.1} parent=11 // pred_check_branch
          %200 = sbr.rel (%p198) target = $region28
        $region27: #{tpu_custom_call.1} parent=11 // pred_region
          _
        $region28: #{tpu_custom_call.1} parent=11 // pred_fallthru
          _
      $region12: #{tpu_custom_call.1} parent=5 // pred_fallthru
        _
      %p201 = scmp.lt.s32.totalorder %s18, 2
      // Predicated region
      $region29: #{tpu_custom_call.1} parent=5 // pred_check
        %p202 = pneg %p201
      $region30: #{tpu_custom_call.1} parent=5 // pred_check_branch
        %204 = sbr.rel (%p202) target = $region32
      $region31: #{tpu_custom_call.1} parent=5 // pred_region
        // Predicated region
        $region33: #{tpu_custom_call.1} parent=31 // pred_check
          %p205 = pneg %p38
        $region34: #{tpu_custom_call.1} parent=31 // pred_check_branch
          %207 = sbr.rel (%p205) target = $region36
        $region35: #{tpu_custom_call.1} parent=31 // pred_region
          %s208 = sand.u32 %s28, 1
          %s209 = scalar_lea.sflag [#allocation3], %s208
          %s210 = sand.u32 %s28, 1
          %s211 = smul.addr %s210, 16
          %s212 = scalar_lea.vmem [#allocation2], %s211
          %s213 = smul.u32 2, %s18
          %s214 = ssub.s32 3, %s213
          %p215 = scmp.lt.s32.totalorder %s214, 2
          %s216 = scalar_select %p215, %s214, 2
          %s217 = smul.u32 128, %s216
          %s219 = ssub.s32 256, %s217
          %220 = vsyncadd %s209, %s219
          %p221 = scmp.ne.s32.totalorder 0, %s217
          %s222 = smul.addr %s213, 128
          %s223 = scalar_lea.hbm %s0, %s222
          %s224 = smul.u32 8, %s216
          %s225 = sshll.u32 %s212, 4
          %s226 = int_to_ptr.vmem [resolvable:$true] %s225
          %s227 = sshll.u32 %s224, 4
          %231 = dma.hbm_to_vmem [thread:$0]  (%p221), %s223, %s227, %s226, %s209, 128, 128, 8
        $region36: #{tpu_custom_call.1} parent=31 // pred_fallthru
          _
      $region32: #{tpu_custom_call.1} parent=5 // pred_fallthru
        _
      %p232 = scmp.le.s32.totalorder 1, %s18
      %p233 = scmp.lt.s32.totalorder %s18, 3
      %p234 = pnand %p232, %p233
      %p235 = pneg %p234
      // Predicated region
      $region37: #{tpu_custom_call.1} parent=5 // pred_check
        _
      $region38: #{tpu_custom_call.1} parent=5 // pred_check_branch
        %237 = sbr.rel (%p234) target = $region40
      $region39: #{tpu_custom_call.1} parent=5 // pred_region
        %s238 = ssub.s32 %s18, 1
        %s239 = sand.u32 %s31, 1
        %s240 = scalar_lea.sflag [#allocation3], %s239
        %s241 = sand.u32 %s31, 1
        %s242 = smul.addr %s241, 16
        %s243 = scalar_lea.vmem [#allocation2], %s242
        // Predicated region
        $region41: #{tpu_custom_call.1} parent=39 // pred_check
          %p244 = pneg %p44
        $region42: #{tpu_custom_call.1} parent=39 // pred_check_branch
          %246 = sbr.rel (%p244) target = $region44
        $region43: #{tpu_custom_call.1} parent=39 // pred_region
          %247 = dma.done %s240, 256
        $region44: #{tpu_custom_call.1} parent=39 // pred_fallthru
          _
        // Predicated region
        $region45: #{tpu_custom_call.1} parent=39 // pred_check
          %p248 = pneg %p65
        $region46: #{tpu_custom_call.1} parent=39 // pred_check_branch
          %250 = sbr.rel (%p248) target = $region48
        $region47: #{tpu_custom_call.1} parent=39 // pred_region
          %251 = dma.done [#allocation6], 1024
        $region48: #{tpu_custom_call.1} parent=39 // pred_fallthru
          _
        // Predicated region
        $region49: #{tpu_custom_call.1} parent=39 // pred_check
          %p252 = pneg %p107
        $region50: #{tpu_custom_call.1} parent=39 // pred_check_branch
          %254 = sbr.rel (%p252) target = $region52
        $region51: #{tpu_custom_call.1} parent=39 // pred_region
          %255 = dma.done [#allocation6], 8192
        $region52: #{tpu_custom_call.1} parent=39 // pred_fallthru
          _
        %s256 = sand.u32 %s31, 1
        %s257 = scalar_lea.sflag [#allocation3], %s256
        %s258 = sand.u32 %s31, 1
        %s259 = smul.addr %s258, 16
        %s260 = scalar_lea.vmem [#allocation2], %s259
        %p261 = pneg %p44
        %p262 = pneg %p41
        %p263 = pneg %p65
        %p264 = pneg %p62
        %p265 = pneg %p86
        %p266 = pneg %p83
        %p267 = pneg %p107
        %p268 = pneg %p104
        %p269 = pneg %p128
        %p270 = pneg %p125
        %p271 = pneg %p154
        %p272 = pneg %p151
        %s273 = sand.u32 %s141, 1
        %s274 = scalar_lea.sflag [#allocation4], %s273
        %s275 = sand.u32 %s141, 1
        %s276 = smul.addr %s275, 32
        %s277 = scalar_lea.vmem [#allocation8], %s276
        %s278 = smul.u32 2, %s23
        %s279 = ssub.s32 3, %s278
        %p280 = scmp.lt.s32.totalorder %s279, 2
        %s281 = scalar_select %p280, %s279, 2
        %s282 = smul.u32 128, %s281
        %s283 = smul.u32 2, %s23
        %s284 = ssub.s32 3, %s283
        %p285 = scmp.lt.s32.totalorder %s284, 2
        %s286 = scalar_select %p285, %s284, 2
        %s287 = smul.u32 128, %s286
        %s288 = smul.u32 %s287, 2
        %v290 = vld [vmem:[%s243] sm:$0xff]
        %v291 = vld [vmem:[%s243 + $0x8] sm:$0xff]
        %v292 = vpack.c.bf16 %v291, %v290
        %v293 = vld [vmem:[#allocation5] sm:$0xff]
        %v294 = vld [vmem:[#allocation5 + $0x8] sm:$0xff]
        %v295 = vld [vmem:[#allocation5 + $0x10] sm:$0xff]
        %v296 = vld [vmem:[#allocation5 + $0x18] sm:$0xff]
        %v297 = vld [vmem:[#allocation5 + $0x20] sm:$0xff]
        %v298 = vld [vmem:[#allocation5 + $0x28] sm:$0xff]
        %v299 = vld [vmem:[#allocation5 + $0x30] sm:$0xff]
        %v300 = vld [vmem:[#allocation5 + $0x38] sm:$0xff]
        %v301 = vld [vmem:[%s2] sm:$0xf]
        %v303 = vlaneseq
        %v304 = vshrl.u32 %v303, 7
        %v305 = vsub.s32 0, %v304
        %v306 = vrot.slane %v301, %v305
        %v307 = vlaneseq
        %v308 = vshrl.u32 %v307, 7
        %v309 = vsub.s32 1, %v308
        %v310 = vrot.slane %v301, %v309
        %v311 = vlaneseq
        %v312 = vshrl.u32 %v311, 7
        %v313 = vsub.s32 2, %v312
        %v314 = vrot.slane %v301, %v313
        %v315 = vlaneseq
        %v316 = vshrl.u32 %v315, 7
        %v317 = vsub.s32 3, %v316
        %v318 = vrot.slane %v301, %v317
        %v331 = vunpack.c.l.b16 %v293
        %v332 = vunpack.c.h.b16 %v293
        %v333 = vunpack.c.l.b16 %v294
        %v334 = vunpack.c.h.b16 %v294
        %v335 = vunpack.c.l.b16 %v295
        %v336 = vunpack.c.h.b16 %v295
        %v337 = vunpack.c.l.b16 %v296
        %v338 = vunpack.c.h.b16 %v296
        %v339 = vunpack.c.l.b16 %v297
        %v340 = vunpack.c.h.b16 %v297
        %v341 = vunpack.c.l.b16 %v298
        %v342 = vunpack.c.h.b16 %v298
        %v343 = vunpack.c.l.b16 %v299
        %v344 = vunpack.c.h.b16 %v299
        %v345 = vunpack.c.l.b16 %v300
        %v346 = vunpack.c.h.b16 %v300
        %v347 = vpack.c.b16 %v335, %v331
        %v348 = vpack.c.b16 %v336, %v332
        %v349 = vpack.c.b16 %v337, %v333
        %v350 = vpack.c.b16 %v338, %v334
        %v351 = vpack.c.b16 %v343, %v339
        %v352 = vpack.c.b16 %v344, %v340
        %v353 = vpack.c.b16 %v345, %v341
        %v354 = vpack.c.b16 %v346, %v342
        %vm363 = vcmask 261120
        %v365 = vsel %vm363, %v292, 0
        %367 = vmatprep.subr.bf16.mxu0 %v348
        %368 = vmatpush1.bf16.msra.mxu0 %v347
        %369 = vmatprep.subr.bf16.mxu0 %v352
        %370 = vmatpush1.bf16.msra.mxu0 %v351
        %371 = vmatprep.subr.bf16.mxu0 0
        %372 = vmatpush1.bf16.msra.mxu0 0
        %373 = vmatprep.subr.bf16.mxu0 0
        %374 = vmatpush1.bf16.msra.mxu0 0
        %375 = vmatprep.subr.bf16.mxu0 0
        %376 = vmatpush1.bf16.msra.mxu0 0
        %377 = vmatprep.subr.bf16.mxu0 0
        %378 = vmatpush1.bf16.msra.mxu0 0
        %379 = vmatprep.subr.bf16.mxu0 0
        %380 = vmatpush1.bf16.msra.mxu0 0
        %381 = vmatprep.subr.bf16.mxu0 0
        %382 = vmatpush1.bf16.msra.mxu0 0
        %383 = vmatprep.subr.bf16.mxu0 0
        %384 = vmatpush1.bf16.msra.mxu0 0
        %385 = vmatprep.subr.bf16.mxu0 0
        %386 = vmatpush1.bf16.msra.mxu0 0
        %387 = vmatprep.subr.bf16.mxu0 0
        %388 = vmatpush1.bf16.msra.mxu0 0
        %389 = vmatprep.subr.bf16.mxu0 0
        %390 = vmatpush1.bf16.msra.mxu0 0
        %391 = vmatprep.subr.bf16.mxu0 0
        %392 = vmatpush1.bf16.msra.mxu0 0
        %393 = vmatprep.subr.bf16.mxu0 0
        %394 = vmatpush1.bf16.msra.mxu0 0
        %395 = vmatprep.subr.bf16.mxu0 0
        %396 = vmatpush1.bf16.msra.mxu0 0
        %397 = vmatprep.subr.bf16.mxu0 0
        %398 = vmatpush1.bf16.msra.mxu0 0
        %399 = vmatprep.mubr.bf16.mxu0 0
        %400 = vmatmul.mubr.bf16.gmra.mrb[0].mxu0 %v365
        %v401 = vpop.f32.mrb[0].mxu0
        %v402 = vadd.f32 %v306, %v401
        %v403 = vpop.f32.mrb[0].mxu0
        %v404 = vadd.f32 %v310, %v403
        %v405 = vpop.f32.mrb[0].mxu0
        %v406 = vadd.f32 %v306, %v405
        %v407 = vpop.f32.mrb[0].mxu0
        %v408 = vadd.f32 %v310, %v407
        %409 = vdwg.mxu0
        %410 = vmatprep.subr.bf16.mxu0 %v350
        %411 = vmatpush1.bf16.msra.mxu0 %v349
        %412 = vmatprep.subr.bf16.mxu0 %v354
        %413 = vmatpush1.bf16.msra.mxu0 %v353
        %414 = vmatprep.subr.bf16.mxu0 0
        %415 = vmatpush1.bf16.msra.mxu0 0
        %416 = vmatprep.subr.bf16.mxu0 0
        %417 = vmatpush1.bf16.msra.mxu0 0
        %418 = vmatprep.subr.bf16.mxu0 0
        %419 = vmatpush1.bf16.msra.mxu0 0
        %420 = vmatprep.subr.bf16.mxu0 0
        %421 = vmatpush1.bf16.msra.mxu0 0
        %422 = vmatprep.subr.bf16.mxu0 0
        %423 = vmatpush1.bf16.msra.mxu0 0
        %424 = vmatprep.subr.bf16.mxu0 0
        %425 = vmatpush1.bf16.msra.mxu0 0
        %426 = vmatprep.subr.bf16.mxu0 0
        %427 = vmatpush1.bf16.msra.mxu0 0
        %428 = vmatprep.subr.bf16.mxu0 0
        %429 = vmatpush1.bf16.msra.mxu0 0
        %430 = vmatprep.subr.bf16.mxu0 0
        %431 = vmatpush1.bf16.msra.mxu0 0
        %432 = vmatprep.subr.bf16.mxu0 0
        %433 = vmatpush1.bf16.msra.mxu0 0
        %434 = vmatprep.subr.bf16.mxu0 0
        %435 = vmatpush1.bf16.msra.mxu0 0
        %436 = vmatprep.subr.bf16.mxu0 0
        %437 = vmatpush1.bf16.msra.mxu0 0
        %438 = vmatprep.subr.bf16.mxu0 0
        %439 = vmatpush1.bf16.msra.mxu0 0
        %440 = vmatprep.subr.bf16.mxu0 0
        %441 = vmatpush1.bf16.msra.mxu0 0
        %442 = vmatprep.mubr.bf16.mxu0 0
        %443 = vmatmul.mubr.bf16.gmra.mrb[0].mxu0 %v365
        %v444 = vpop.f32.mrb[0].mxu0
        %v445 = vadd.f32 %v314, %v444
        %v446 = vpop.f32.mrb[0].mxu0
        %v447 = vadd.f32 %v318, %v446
        %v448 = vpop.f32.mrb[0].mxu0
        %v449 = vadd.f32 %v314, %v448
        %v450 = vpop.f32.mrb[0].mxu0
        %v451 = vadd.f32 %v318, %v450
        %452 = vdwg.mxu0
        %v453 = vmul.f32 %v402, 0.1
        %v454 = vmul.f32 %v404, 0.1
        %v455 = vmul.f32 %v445, 0.1
        %v456 = vmul.f32 %v447, 0.1
        %v457 = vmul.f32 %v406, 0.1
        %v458 = vmul.f32 %v408, 0.1
        %v459 = vmul.f32 %v449, 0.1
        %v460 = vmul.f32 %v451, 0.1
        %v461 = vmax.f32 %v402, %v453
        %v462 = vmax.f32 %v404, %v454
        %v463 = vmax.f32 %v445, %v455
        %v464 = vmax.f32 %v447, %v456
        %v465 = vmax.f32 %v406, %v457
        %v466 = vmax.f32 %v408, %v458
        %v467 = vmax.f32 %v449, %v459
        %v468 = vmax.f32 %v451, %v460
        %v469 = vpack.c.bf16 %v465, %v461
        %v470 = vpack.c.bf16 %v466, %v462
        %v471 = vpack.c.bf16 %v467, %v463
        %v472 = vpack.c.bf16 %v468, %v464
        %v473 = vld [vmem:[#allocation7] sm:$0xff]
        %v474 = vld [vmem:[#allocation7 + $0x8] sm:$0xff]
        %v475 = vld [vmem:[#allocation7 + $0x10] sm:$0xff]
        %v476 = vld [vmem:[#allocation7 + $0x18] sm:$0xff]
        %v477 = vld [vmem:[#allocation7 + $0x20] sm:$0xff]
        %v478 = vld [vmem:[#allocation7 + $0x28] sm:$0xff]
        %v479 = vld [vmem:[#allocation7 + $0x30] sm:$0xff]
        %v480 = vld [vmem:[#allocation7 + $0x38] sm:$0xff]
        %v481 = vld [vmem:[#allocation7 + $0x40] sm:$0xff]
        %v482 = vld [vmem:[#allocation7 + $0x48] sm:$0xff]
        %v483 = vld [vmem:[#allocation7 + $0x50] sm:$0xff]
        %v484 = vld [vmem:[#allocation7 + $0x58] sm:$0xff]
        %v485 = vld [vmem:[#allocation7 + $0x60] sm:$0xff]
        %v486 = vld [vmem:[#allocation7 + $0x68] sm:$0xff]
        %v487 = vld [vmem:[#allocation7 + $0x70] sm:$0xff]
        %v488 = vld [vmem:[#allocation7 + $0x78] sm:$0xff]
        %v489 = vld [vmem:[#allocation7 + $0x80] sm:$0xff]
        %v490 = vld [vmem:[#allocation7 + $0x88] sm:$0xff]
        %v491 = vld [vmem:[#allocation7 + $0x90] sm:$0xff]
        %v492 = vld [vmem:[#allocation7 + $0x98] sm:$0xff]
        %v493 = vld [vmem:[#allocation7 + $0xa0] sm:$0xff]
        %v494 = vld [vmem:[#allocation7 + $0xa8] sm:$0xff]
        %v495 = vld [vmem:[#allocation7 + $0xb0] sm:$0xff]
        %v496 = vld [vmem:[#allocation7 + $0xb8] sm:$0xff]
        %v497 = vld [vmem:[#allocation7 + $0xc0] sm:$0xff]
        %v498 = vld [vmem:[#allocation7 + $0xc8] sm:$0xff]
        %v499 = vld [vmem:[#allocation7 + $0xd0] sm:$0xff]
        %v500 = vld [vmem:[#allocation7 + $0xd8] sm:$0xff]
        %v501 = vld [vmem:[#allocation7 + $0xe0] sm:$0xff]
        %v502 = vld [vmem:[#allocation7 + $0xe8] sm:$0xff]
        %v503 = vld [vmem:[#allocation7 + $0xf0] sm:$0xff]
        %v504 = vld [vmem:[#allocation7 + $0xf8] sm:$0xff]
        %v505 = vld [vmem:[#allocation7 + $0x100] sm:$0xff]
        %v506 = vld [vmem:[#allocation7 + $0x108] sm:$0xff]
        %v507 = vld [vmem:[#allocation7 + $0x110] sm:$0xff]
        %v508 = vld [vmem:[#allocation7 + $0x118] sm:$0xff]
        %v509 = vld [vmem:[#allocation7 + $0x120] sm:$0xff]
        %v510 = vld [vmem:[#allocation7 + $0x128] sm:$0xff]
        %v511 = vld [vmem:[#allocation7 + $0x130] sm:$0xff]
        %v512 = vld [vmem:[#allocation7 + $0x138] sm:$0xff]
        %v513 = vld [vmem:[#allocation7 + $0x140] sm:$0xff]
        %v514 = vld [vmem:[#allocation7 + $0x148] sm:$0xff]
        %v515 = vld [vmem:[#allocation7 + $0x150] sm:$0xff]
        %v516 = vld [vmem:[#allocation7 + $0x158] sm:$0xff]
        %v517 = vld [vmem:[#allocation7 + $0x160] sm:$0xff]
        %v518 = vld [vmem:[#allocation7 + $0x168] sm:$0xff]
        %v519 = vld [vmem:[#allocation7 + $0x170] sm:$0xff]
        %v520 = vld [vmem:[#allocation7 + $0x178] sm:$0xff]
        %v521 = vld [vmem:[#allocation7 + $0x180] sm:$0xff]
        %v522 = vld [vmem:[#allocation7 + $0x188] sm:$0xff]
        %v523 = vld [vmem:[#allocation7 + $0x190] sm:$0xff]
        %v524 = vld [vmem:[#allocation7 + $0x198] sm:$0xff]
        %v525 = vld [vmem:[#allocation7 + $0x1a0] sm:$0xff]
        %v526 = vld [vmem:[#allocation7 + $0x1a8] sm:$0xff]
        %v527 = vld [vmem:[#allocation7 + $0x1b0] sm:$0xff]
        %v528 = vld [vmem:[#allocation7 + $0x1b8] sm:$0xff]
        %v529 = vld [vmem:[#allocation7 + $0x1c0] sm:$0xff]
        %v530 = vld [vmem:[#allocation7 + $0x1c8] sm:$0xff]
        %v531 = vld [vmem:[#allocation7 + $0x1d0] sm:$0xff]
        %v532 = vld [vmem:[#allocation7 + $0x1d8] sm:$0xff]
        %v533 = vld [vmem:[#allocation7 + $0x1e0] sm:$0xff]
        %v534 = vld [vmem:[#allocation7 + $0x1e8] sm:$0xff]
        %v535 = vld [vmem:[#allocation7 + $0x1f0] sm:$0xff]
        %v536 = vld [vmem:[#allocation7 + $0x1f8] sm:$0xff]
        %v537 = vld [vmem:[%s4] sm:$0x3]
        %v539 = vlaneseq
        %v540 = vshrl.u32 %v539, 7
        %v541 = vsub.s32 0, %v540
        %v542 = vrot.slane %v537, %v541
        %v543 = vlaneseq
        %v544 = vshrl.u32 %v543, 7
        %v545 = vsub.s32 1, %v544
        %v546 = vrot.slane %v537, %v545
        %v613 = vunpack.c.l.b16 %v473
        %v614 = vunpack.c.h.b16 %v473
        %v615 = vunpack.c.l.b16 %v474
        %v616 = vunpack.c.h.b16 %v474
        %v617 = vunpack.c.l.b16 %v475
        %v618 = vunpack.c.h.b16 %v475
        %v619 = vunpack.c.l.b16 %v476
        %v620 = vunpack.c.h.b16 %v476
        %v621 = vunpack.c.l.b16 %v477
        %v622 = vunpack.c.h.b16 %v477
        %v623 = vunpack.c.l.b16 %v478
        %v624 = vunpack.c.h.b16 %v478
        %v625 = vunpack.c.l.b16 %v479
        %v626 = vunpack.c.h.b16 %v479
        %v627 = vunpack.c.l.b16 %v480
        %v628 = vunpack.c.h.b16 %v480
        %v629 = vunpack.c.l.b16 %v481
        %v630 = vunpack.c.h.b16 %v481
        %v631 = vunpack.c.l.b16 %v482
        %v632 = vunpack.c.h.b16 %v482
        %v633 = vunpack.c.l.b16 %v483
        %v634 = vunpack.c.h.b16 %v483
        %v635 = vunpack.c.l.b16 %v484
        %v636 = vunpack.c.h.b16 %v484
        %v637 = vunpack.c.l.b16 %v485
        %v638 = vunpack.c.h.b16 %v485
        %v639 = vunpack.c.l.b16 %v486
        %v640 = vunpack.c.h.b16 %v486
        %v641 = vunpack.c.l.b16 %v487
        %v642 = vunpack.c.h.b16 %v487
        %v643 = vunpack.c.l.b16 %v488
        %v644 = vunpack.c.h.b16 %v488
        %v645 = vunpack.c.l.b16 %v489
        %v646 = vunpack.c.h.b16 %v489
        %v647 = vunpack.c.l.b16 %v490
        %v648 = vunpack.c.h.b16 %v490
        %v649 = vunpack.c.l.b16 %v491
        %v650 = vunpack.c.h.b16 %v491
        %v651 = vunpack.c.l.b16 %v492
        %v652 = vunpack.c.h.b16 %v492
        %v653 = vunpack.c.l.b16 %v493
        %v654 = vunpack.c.h.b16 %v493
        %v655 = vunpack.c.l.b16 %v494
        %v656 = vunpack.c.h.b16 %v494
        %v657 = vunpack.c.l.b16 %v495
        %v658 = vunpack.c.h.b16 %v495
        %v659 = vunpack.c.l.b16 %v496
        %v660 = vunpack.c.h.b16 %v496
        %v661 = vunpack.c.l.b16 %v497
        %v662 = vunpack.c.h.b16 %v497
        %v663 = vunpack.c.l.b16 %v498
        %v664 = vunpack.c.h.b16 %v498
        %v665 = vunpack.c.l.b16 %v499
        %v666 = vunpack.c.h.b16 %v499
        %v667 = vunpack.c.l.b16 %v500
        %v668 = vunpack.c.h.b16 %v500
        %v669 = vunpack.c.l.b16 %v501
        %v670 = vunpack.c.h.b16 %v501
        %v671 = vunpack.c.l.b16 %v502
        %v672 = vunpack.c.h.b16 %v502
        %v673 = vunpack.c.l.b16 %v503
        %v674 = vunpack.c.h.b16 %v503
        %v675 = vunpack.c.l.b16 %v504
        %v676 = vunpack.c.h.b16 %v504
        %v677 = vunpack.c.l.b16 %v505
        %v678 = vunpack.c.h.b16 %v505
        %v679 = vunpack.c.l.b16 %v506
        %v680 = vunpack.c.h.b16 %v506
        %v681 = vunpack.c.l.b16 %v507
        %v682 = vunpack.c.h.b16 %v507
        %v683 = vunpack.c.l.b16 %v508
        %v684 = vunpack.c.h.b16 %v508
        %v685 = vunpack.c.l.b16 %v509
        %v686 = vunpack.c.h.b16 %v509
        %v687 = vunpack.c.l.b16 %v510
        %v688 = vunpack.c.h.b16 %v510
        %v689 = vunpack.c.l.b16 %v511
        %v690 = vunpack.c.h.b16 %v511
        %v691 = vunpack.c.l.b16 %v512
        %v692 = vunpack.c.h.b16 %v512
        %v693 = vunpack.c.l.b16 %v513
        %v694 = vunpack.c.h.b16 %v513
        %v695 = vunpack.c.l.b16 %v514
        %v696 = vunpack.c.h.b16 %v514
        %v697 = vunpack.c.l.b16 %v515
        %v698 = vunpack.c.h.b16 %v515
        %v699 = vunpack.c.l.b16 %v516
        %v700 = vunpack.c.h.b16 %v516
        %v701 = vunpack.c.l.b16 %v517
        %v702 = vunpack.c.h.b16 %v517
        %v703 = vunpack.c.l.b16 %v518
        %v704 = vunpack.c.h.b16 %v518
        %v705 = vunpack.c.l.b16 %v519
        %v706 = vunpack.c.h.b16 %v519
        %v707 = vunpack.c.l.b16 %v520
        %v708 = vunpack.c.h.b16 %v520
        %v709 = vunpack.c.l.b16 %v521
        %v710 = vunpack.c.h.b16 %v521
        %v711 = vunpack.c.l.b16 %v522
        %v712 = vunpack.c.h.b16 %v522
        %v713 = vunpack.c.l.b16 %v523
        %v714 = vunpack.c.h.b16 %v523
        %v715 = vunpack.c.l.b16 %v524
        %v716 = vunpack.c.h.b16 %v524
        %v717 = vunpack.c.l.b16 %v525
        %v718 = vunpack.c.h.b16 %v525
        %v719 = vunpack.c.l.b16 %v526
        %v720 = vunpack.c.h.b16 %v526
        %v721 = vunpack.c.l.b16 %v527
        %v722 = vunpack.c.h.b16 %v527
        %v723 = vunpack.c.l.b16 %v528
        %v724 = vunpack.c.h.b16 %v528
        %v725 = vunpack.c.l.b16 %v529
        %v726 = vunpack.c.h.b16 %v529
        %v727 = vunpack.c.l.b16 %v530
        %v728 = vunpack.c.h.b16 %v530
        %v729 = vunpack.c.l.b16 %v531
        %v730 = vunpack.c.h.b16 %v531
        %v731 = vunpack.c.l.b16 %v532
        %v732 = vunpack.c.h.b16 %v532
        %v733 = vunpack.c.l.b16 %v533
        %v734 = vunpack.c.h.b16 %v533
        %v735 = vunpack.c.l.b16 %v534
        %v736 = vunpack.c.h.b16 %v534
        %v737 = vunpack.c.l.b16 %v535
        %v738 = vunpack.c.h.b16 %v535
        %v739 = vunpack.c.l.b16 %v536
        %v740 = vunpack.c.h.b16 %v536
        %v741 = vpack.c.b16 %v615, %v613
        %v742 = vpack.c.b16 %v616, %v614
        %v743 = vpack.c.b16 %v619, %v617
        %v744 = vpack.c.b16 %v620, %v618
        %v745 = vpack.c.b16 %v623, %v621
        %v746 = vpack.c.b16 %v624, %v622
        %v747 = vpack.c.b16 %v627, %v625
        %v748 = vpack.c.b16 %v628, %v626
        %v749 = vpack.c.b16 %v631, %v629
        %v750 = vpack.c.b16 %v632, %v630
        %v751 = vpack.c.b16 %v635, %v633
        %v752 = vpack.c.b16 %v636, %v634
        %v753 = vpack.c.b16 %v639, %v637
        %v754 = vpack.c.b16 %v640, %v638
        %v755 = vpack.c.b16 %v643, %v641
        %v756 = vpack.c.b16 %v644, %v642
        %v757 = vpack.c.b16 %v647, %v645
        %v758 = vpack.c.b16 %v648, %v646
        %v759 = vpack.c.b16 %v651, %v649
        %v760 = vpack.c.b16 %v652, %v650
        %v761 = vpack.c.b16 %v655, %v653
        %v762 = vpack.c.b16 %v656, %v654
        %v763 = vpack.c.b16 %v659, %v657
        %v764 = vpack.c.b16 %v660, %v658
        %v765 = vpack.c.b16 %v663, %v661
        %v766 = vpack.c.b16 %v664, %v662
        %v767 = vpack.c.b16 %v667, %v665
        %v768 = vpack.c.b16 %v668, %v666
        %v769 = vpack.c.b16 %v671, %v669
        %v770 = vpack.c.b16 %v672, %v670
        %v771 = vpack.c.b16 %v675, %v673
        %v772 = vpack.c.b16 %v676, %v674
        %v773 = vpack.c.b16 %v679, %v677
        %v774 = vpack.c.b16 %v680, %v678
        %v775 = vpack.c.b16 %v683, %v681
        %v776 = vpack.c.b16 %v684, %v682
        %v777 = vpack.c.b16 %v687, %v685
        %v778 = vpack.c.b16 %v688, %v686
        %v779 = vpack.c.b16 %v691, %v689
        %v780 = vpack.c.b16 %v692, %v690
        %v781 = vpack.c.b16 %v695, %v693
        %v782 = vpack.c.b16 %v696, %v694
        %v783 = vpack.c.b16 %v699, %v697
        %v784 = vpack.c.b16 %v700, %v698
        %v785 = vpack.c.b16 %v703, %v701
        %v786 = vpack.c.b16 %v704, %v702
        %v787 = vpack.c.b16 %v707, %v705
        %v788 = vpack.c.b16 %v708, %v706
        %v789 = vpack.c.b16 %v711, %v709
        %v790 = vpack.c.b16 %v712, %v710
        %v791 = vpack.c.b16 %v715, %v713
        %v792 = vpack.c.b16 %v716, %v714
        %v793 = vpack.c.b16 %v719, %v717
        %v794 = vpack.c.b16 %v720, %v718
        %v795 = vpack.c.b16 %v723, %v721
        %v796 = vpack.c.b16 %v724, %v722
        %v797 = vpack.c.b16 %v727, %v725
        %v798 = vpack.c.b16 %v728, %v726
        %v799 = vpack.c.b16 %v731, %v729
        %v800 = vpack.c.b16 %v732, %v730
        %v801 = vpack.c.b16 %v735, %v733
        %v802 = vpack.c.b16 %v736, %v734
        %v803 = vpack.c.b16 %v739, %v737
        %v804 = vpack.c.b16 %v740, %v738
        %869 = vmatprep.subr.bf16.mxu0 %v742
        %870 = vmatpush1.bf16.msra.mxu0 %v741
        %871 = vmatprep.subr.bf16.mxu0 %v744
        %872 = vmatpush1.bf16.msra.mxu0 %v743
        %873 = vmatprep.subr.bf16.mxu0 %v746
        %874 = vmatpush1.bf16.msra.mxu0 %v745
        %875 = vmatprep.subr.bf16.mxu0 %v748
        %876 = vmatpush1.bf16.msra.mxu0 %v747
        %877 = vmatprep.subr.bf16.mxu0 %v750
        %878 = vmatpush1.bf16.msra.mxu0 %v749
        %879 = vmatprep.subr.bf16.mxu0 %v752
        %880 = vmatpush1.bf16.msra.mxu0 %v751
        %881 = vmatprep.subr.bf16.mxu0 %v754
        %882 = vmatpush1.bf16.msra.mxu0 %v753
        %883 = vmatprep.subr.bf16.mxu0 %v756
        %884 = vmatpush1.bf16.msra.mxu0 %v755
        %885 = vmatprep.subr.bf16.mxu0 %v758
        %886 = vmatpush1.bf16.msra.mxu0 %v757
        %887 = vmatprep.subr.bf16.mxu0 %v760
        %888 = vmatpush1.bf16.msra.mxu0 %v759
        %889 = vmatprep.subr.bf16.mxu0 %v762
        %890 = vmatpush1.bf16.msra.mxu0 %v761
        %891 = vmatprep.subr.bf16.mxu0 %v764
        %892 = vmatpush1.bf16.msra.mxu0 %v763
        %893 = vmatprep.subr.bf16.mxu0 %v766
        %894 = vmatpush1.bf16.msra.mxu0 %v765
        %895 = vmatprep.subr.bf16.mxu0 %v768
        %896 = vmatpush1.bf16.msra.mxu0 %v767
        %897 = vmatprep.subr.bf16.mxu0 %v770
        %898 = vmatpush1.bf16.msra.mxu0 %v769
        %899 = vmatprep.subr.bf16.mxu0 %v772
        %900 = vmatpush1.bf16.msra.mxu0 %v771
        %901 = vmatprep.mubr.bf16.mxu0 %v470
        %902 = vmatmul.mubr.bf16.gmra.mrb[0].mxu0 %v469
        %v903 = vpop.f32.mrb[0].mxu0
        %v904 = vadd.f32 %v542, %v903
        %v905 = vpop.f32.mrb[0].mxu0
        %v906 = vadd.f32 %v546, %v905
        %v907 = vpop.f32.mrb[0].mxu0
        %v908 = vadd.f32 %v542, %v907
        %v909 = vpop.f32.mrb[0].mxu0
        %v910 = vadd.f32 %v546, %v909
        %911 = vdwg.mxu0
        %912 = vmatprep.subr.bf16.mxu0 %v774
        %913 = vmatpush1.bf16.msra.mxu0 %v773
        %914 = vmatprep.subr.bf16.mxu0 %v776
        %915 = vmatpush1.bf16.msra.mxu0 %v775
        %916 = vmatprep.subr.bf16.mxu0 %v778
        %917 = vmatpush1.bf16.msra.mxu0 %v777
        %918 = vmatprep.subr.bf16.mxu0 %v780
        %919 = vmatpush1.bf16.msra.mxu0 %v779
        %920 = vmatprep.subr.bf16.mxu0 %v782
        %921 = vmatpush1.bf16.msra.mxu0 %v781
        %922 = vmatprep.subr.bf16.mxu0 %v784
        %923 = vmatpush1.bf16.msra.mxu0 %v783
        %924 = vmatprep.subr.bf16.mxu0 %v786
        %925 = vmatpush1.bf16.msra.mxu0 %v785
        %926 = vmatprep.subr.bf16.mxu0 %v788
        %927 = vmatpush1.bf16.msra.mxu0 %v787
        %928 = vmatprep.subr.bf16.mxu0 %v790
        %929 = vmatpush1.bf16.msra.mxu0 %v789
        %930 = vmatprep.subr.bf16.mxu0 %v792
        %931 = vmatpush1.bf16.msra.mxu0 %v791
        %932 = vmatprep.subr.bf16.mxu0 %v794
        %933 = vmatpush1.bf16.msra.mxu0 %v793
        %934 = vmatprep.subr.bf16.mxu0 %v796
        %935 = vmatpush1.bf16.msra.mxu0 %v795
        %936 = vmatprep.subr.bf16.mxu0 %v798
        %937 = vmatpush1.bf16.msra.mxu0 %v797
        %938 = vmatprep.subr.bf16.mxu0 %v800
        %939 = vmatpush1.bf16.msra.mxu0 %v799
        %940 = vmatprep.subr.bf16.mxu0 %v802
        %941 = vmatpush1.bf16.msra.mxu0 %v801
        %942 = vmatprep.subr.bf16.mxu0 %v804
        %943 = vmatpush1.bf16.msra.mxu0 %v803
        %944 = vmatprep.mubr.bf16.mxu0 %v472
        %945 = vmatmul.mubr.bf16.gmra.mrb[0].mxu0 %v471
        %v946 = vpop.f32.mrb[0].mxu0
        %v947 = vadd.f32 %v904, %v946
        %v948 = vpop.f32.mrb[0].mxu0
        %v949 = vadd.f32 %v906, %v948
        %v950 = vpop.f32.mrb[0].mxu0
        %v951 = vadd.f32 %v908, %v950
        %v952 = vpop.f32.mrb[0].mxu0
        %v953 = vadd.f32 %v910, %v952
        %954 = vdwg.mxu0
        %955 = vst [vmem:[%s277] sm:$0xff] %v947
        %956 = vst [vmem:[%s277 + $0x8] sm:$0xff] %v949
        %957 = vst [vmem:[%s277 + $0x10] sm:$0xff] %v951
        %958 = vst [vmem:[%s277 + $0x18] sm:$0xff] %v953
        %s959 = sand.u32 %s141, 1
        %s960 = scalar_lea.sflag [#allocation4], %s959
        %s961 = sand.u32 %s141, 1
        %s962 = smul.addr %s961, 32
        %s963 = scalar_lea.vmem [#allocation8], %s962
        // Predicated region
        $region53: #{tpu_custom_call.1} parent=39 // pred_check
          %p964 = pneg %p151
        $region54: #{tpu_custom_call.1} parent=39 // pred_check_branch
          %966 = sbr.rel (%p964) target = $region56
        $region55: #{tpu_custom_call.1} parent=39 // pred_region
          %s967 = smul.u32 2, %s23
          %s968 = ssub.s32 3, %s967
          %p969 = scmp.lt.s32.totalorder %s968, 2
          %s970 = scalar_select %p969, %s968, 2
          %s971 = smul.u32 128, %s970
          %s972 = smul.u32 %s971, 2
          %s974 = ssub.s32 512, %s972
          %975 = vsyncadd %s960, %s974
          %p976 = scmp.ne.s32.totalorder 0, %s972
          %s977 = smul.addr %s967, 2
          %s978 = smul.addr %s977, 128
          %s979 = scalar_lea.hbm %s5, %s978
          %s980 = smul.u32 16, %s970
          %s981 = sshll.u32 %s963, 4
          %s982 = int_to_ptr.vmem [resolvable:$true] %s981
          %s983 = sshll.u32 %s980, 4
          %987 = dma.vmem_to_hbm [thread:$0]  (%p976), %s982, %s983, %s979, %s960, 256, 256, 16
        $region56: #{tpu_custom_call.1} parent=39 // pred_fallthru
          _
      $region40: #{tpu_custom_call.1} parent=5 // pred_fallthru
        _
      %p988 = scmp.le.s32.totalorder 2, %s18
      // Predicated region
      $region57: #{tpu_custom_call.1} parent=5 // pred_check
        %p989 = pneg %p988
      $region58: #{tpu_custom_call.1} parent=5 // pred_check_branch
        %991 = sbr.rel (%p989) target = $region60
      $region59: #{tpu_custom_call.1} parent=5 // pred_region
        %s992 = ssub.s32 %s18, 2
        // Predicated region
        $region61: #{tpu_custom_call.1} parent=59 // pred_check
          %p993 = pneg %p157
        $region62: #{tpu_custom_call.1} parent=59 // pred_check_branch
          %995 = sbr.rel (%p993) target = $region64
        $region63: #{tpu_custom_call.1} parent=59 // pred_region
          %s996 = sand.u32 %s142, 1
          %s997 = scalar_lea.sflag [#allocation4], %s996
          %s998 = sand.u32 %s142, 1
          %s999 = smul.addr %s998, 32
          %s1000 = scalar_lea.vmem [#allocation8], %s999
          %1001 = dma.done %s997, 512
        $region64: #{tpu_custom_call.1} parent=59 // pred_fallthru
          _
      $region60: #{tpu_custom_call.1} parent=5 // pred_fallthru
        _
    $region6: #{tpu_custom_call.1} parent=1 // loop_footer
      %s22 = sadd.s32 1, %s18
    $region7: #{tpu_custom_call.1} parent=1 // loop_footer_branch
      %17 = sbr.rel target = $region3
    $region8: #{tpu_custom_call.1} parent=1 // loop_exit
      _
    %1002 = vsyncpa [#allocation3], 1
    %s1003 = scalar_lea.sflag [#allocation3], 1
    %1004 = vsyncpa %s1003, 1
    %1005 = vsyncpa [#allocation6], 1
    %1006 = vsyncpa [#allocation4], 1
    %s1007 = scalar_lea.sflag [#allocation4], 1
    %1008 = vsyncpa %s1007, 1

</llo_original>
